<compile_context>
chip_gen: v7x
topology: tpu7x:2x2x1
jax: 0.10.0
libtpu: 0.0.40
codegen_flags: <defaults>
</compile_context>

<pallas_src>
import functools

import jax
import jax.numpy as jnp
from jax import lax
from jax.experimental import pallas as pl
from jax.experimental.pallas import tpu as pltpu

LANE = 128
SUBLANE = 8


def _round_up(x, m):
    return ((x + m - 1) // m) * m


def _pad2d(x, rows, cols):
    r, c = x.shape
    if r == rows and c == cols:
        return x
    return jnp.pad(x, ((0, rows - r), (0, cols - c)))


def _leaky_relu(x, negative_slope=0.2):
    return jnp.where(x > 0, x, negative_slope * x)


def _log_sigmoid(x):
    # numerically stable log(sigmoid(x)) = min(x, 0) - log1p(exp(-|x|))
    return jnp.minimum(x, 0.0) - jnp.log1p(jnp.exp(-jnp.abs(x)))


def _ige_kernel(
    # ---- batch-tiled operands: (TB, .) blocks, f32 ---------------------------
    src_attr_ref, tgt_attr_ref,          # (TB, A_pad)
    plain_emb_ref, attr_emb_ref,         # (TB, D_pad)
    pl_wt_ref, pl_bt_ref,                # (TB, D_pad), (TB, 1)
    at_wt_ref, at_bt_ref,                # (TB, D_pad), (TB, 1)
    row_mask_ref,                        # (TB, 1)
    # ---- VMEM-resident weights (constant index_map) --------------------------
    enc_w1_ref, enc_b1_ref,              # (A_pad, H0_pad) bf16, (1, H0_pad) f32
    enc_w2_ref, enc_b2_ref,              # (H0_pad, H1_pad) bf16, (1, H1_pad) f32
    pq_emb_ref, pq_at_ref,               # (H1_pad, D_pad) bf16 (folded P @ Q)
    pl_wn_ref, pl_bn_ref,                # (S_pad, D_pad) bf16, (1, S_pad) f32
    at_wn_ref, at_bn_ref,                # (S_pad, D_pad) bf16, (1, S_pad) f32
    neg_mask_ref,                        # (1, S_pad) f32
    # ---- outputs: per-tile lane-dense partial sums ----------------------------
    pos_sum_ref, neg_sum_ref,            # (1, 1, 128) f32
):
    tb = src_attr_ref.shape[0]

    # ---- AttributeEncoder, both batches fused into one (2*TB, A) pass --------
    attrs = jnp.concatenate([src_attr_ref[...], tgt_attr_ref[...]], axis=0)
    h = jnp.dot(attrs.astype(jnp.bfloat16), enc_w1_ref[...],
                preferred_element_type=jnp.float32) + enc_b1_ref[...]
    h = _leaky_relu(h)
    h = jnp.dot(h.astype(jnp.bfloat16), enc_w2_ref[...],
                preferred_element_type=jnp.float32) + enc_b2_ref[...]
    d = _leaky_relu(h)                           # (2*TB, H1_pad) f32
    source_d = d[:tb]
    target_d = d[tb:]

    # ---- AttributedEmbedding: base + d @ (P @ Q)   (PQ folded host-side) -----
    attr_vec = attr_emb_ref[...] + jnp.dot(
        source_d.astype(jnp.bfloat16), pq_emb_ref[...],
        preferred_element_type=jnp.float32)
    plain_vec = plain_emb_ref[...]

    # ---- positive logits ------------------------------------------------------
    at_target = at_wt_ref[...] + jnp.dot(
        target_d.astype(jnp.bfloat16), pq_at_ref[...],
        preferred_element_type=jnp.float32)
    p1 = jnp.sum(plain_vec * pl_wt_ref[...], axis=-1, keepdims=True) + pl_bt_ref[...]
    p2 = jnp.sum(attr_vec * at_target, axis=-1, keepdims=True) + at_bt_ref[...]
    pos_logits = p1 + p2                          # (TB, 1)

    # ---- negative logits: contract over D; negatives stay lane-dense (S, D) --
    dn = (((1,), (1,)), ((), ()))
    n1 = lax.dot_general(plain_vec.astype(jnp.bfloat16), pl_wn_ref[...], dn,
                         preferred_element_type=jnp.float32) + pl_bn_ref[...]
    n2 = lax.dot_general(attr_vec.astype(jnp.bfloat16), at_wn_ref[...], dn,
                         preferred_element_type=jnp.float32) + at_bn_ref[...]
    neg_logits = n1 + n2                          # (TB, S_pad)

    # ---- masked partial sums of the log-sigmoid losses ------------------------
    row_mask = row_mask_ref[...]                  # (TB, 1)
    neg_mask = neg_mask_ref[...]                  # (1, S_pad)
    pos_part = jnp.sum(_log_sigmoid(pos_logits) * row_mask)
    neg_part = jnp.sum(_log_sigmoid(-neg_logits) * (row_mask * neg_mask))

    pos_sum_ref[...] = jnp.broadcast_to(pos_part, (1, 1, LANE)).astype(jnp.float32)
    neg_sum_ref[...] = jnp.broadcast_to(neg_part, (1, 1, LANE)).astype(jnp.float32)


def init_params(key, x_size, y_size, label_size, emb_dim, n_factors,
                n_raw_attrs, hidden_units):
    n_attrs = hidden_units[-1]
    ks = iter(jax.random.split(key, 24))

    def nrm(shape, scale=0.1):
        return (scale * jax.random.normal(next(ks), shape)).astype(jnp.float32)

    p = {
        # AttributeEncoder (weights stored (in, out) so the kernel does x @ W)
        'enc_w1': nrm((n_raw_attrs, hidden_units[0])),
        'enc_b1': jnp.zeros((1, hidden_units[0]), jnp.float32),
        'enc_w2': nrm((hidden_units[0], hidden_units[1])),
        'enc_b2': jnp.zeros((1, hidden_units[1]), jnp.float32),
        # AttributedEmbedding tables + factors
        'x_emb_E': nrm((x_size, emb_dim)), 'x_emb_P': nrm((n_attrs, n_factors)),
        'x_emb_Q': nrm((n_factors, emb_dim)),
        'y_emb_E': nrm((y_size, emb_dim)), 'y_emb_P': nrm((n_attrs, n_factors)),
        'y_emb_Q': nrm((n_factors, emb_dim)),
        # NSSoftmax output tables
        'x2y_W': nrm((y_size, emb_dim)), 'x2y_b': jnp.zeros((y_size,), jnp.float32),
        'y2x_W': nrm((x_size, emb_dim)), 'y2x_b': jnp.zeros((x_size,), jnp.float32),
        # AttributedNSSoftmax output tables + factors
        'x2y_att_W': nrm((y_size, emb_dim)), 'x2y_att_b': jnp.zeros((y_size,), jnp.float32),
        'x2y_att_P': nrm((n_attrs, n_factors)), 'x2y_att_Q': nrm((n_factors, emb_dim)),
        'y2x_att_W': nrm((x_size, emb_dim)), 'y2x_att_b': jnp.zeros((x_size,), jnp.float32),
        'y2x_att_P': nrm((n_attrs, n_factors)), 'y2x_att_Q': nrm((n_factors, emb_dim)),
        # Classification head exists in the module but is unused in forward()
        'cls_W': nrm((emb_dim, label_size)), 'cls_b': jnp.zeros((label_size,), jnp.float32),
    }
    return p


@functools.partial(jax.jit, static_argnames=('x2y', 'batch_tile'))
def ige_forward(params, source_x, source_y, source_attr, source_label,
                target, target_attr, neg_targets, x2y=True, batch_tile=256):
    del source_label  # y_classification is not used inside IGE.forward()
    src_attr = source_attr.astype(jnp.float32)   # .clone().detach().float()
    tgt_attr = target_attr.astype(jnp.float32)

    if x2y:
        plain_emb = jnp.take(params['x_emb_E'], source_x, axis=0)     # x_emb(source_x)
        attr_emb = jnp.take(params['y_emb_E'], source_y, axis=0)      # y_emb(source_y, d) base
        emb_p, emb_q = params['y_emb_P'], params['y_emb_Q']
        sm_w, sm_b = params['x2y_W'], params['x2y_b']
        at_w, at_b = params['x2y_att_W'], params['x2y_att_b']
        at_p, at_q = params['x2y_att_P'], params['x2y_att_Q']
    else:
        plain_emb = jnp.take(params['y_emb_E'], source_y, axis=0)
        attr_emb = jnp.take(params['x_emb_E'], source_x, axis=0)
        emb_p, emb_q = params['x_emb_P'], params['x_emb_Q']
        sm_w, sm_b = params['y2x_W'], params['y2x_b']
        at_w, at_b = params['y2x_att_W'], params['y2x_att_b']
        at_p, at_q = params['y2x_att_P'], params['y2x_att_Q']

    B, A_raw = src_attr.shape
    H0 = params['enc_w1'].shape[1]
    H1 = params['enc_w2'].shape[1]
    D = plain_emb.shape[1]
    S = neg_targets.shape[0]

    # hardware-friendly padded sizes (padded rows/cols are zero and masked out)
    A_pad = _round_up(A_raw, LANE)
    H0_pad = _round_up(H0, LANE)
    H1_pad = _round_up(H1, LANE)
    D_pad = _round_up(D, LANE)
    S_pad = _round_up(S, LANE)
    TB = min(_round_up(batch_tile, SUBLANE), _round_up(B, SUBLANE))
    B_pad = _round_up(B, TB)
    num_tiles = B_pad // TB

    # embedding / softmax-table gathers are glue; negatives kept (S, D) lane-dense
    pl_wt = jnp.take(sm_w, target, axis=0)                    # (B, D)
    pl_bt = jnp.take(sm_b, target, axis=0)[:, None]           # (B, 1)
    pl_wn = jnp.take(sm_w, neg_targets, axis=0)               # (S, D)   (no .T)
    pl_bn = jnp.take(sm_b, neg_targets, axis=0)[None, :]      # (1, S)
    at_wt = jnp.take(at_w, target, axis=0)
    at_bt = jnp.take(at_b, target, axis=0)[:, None]
    at_wn = jnp.take(at_w, neg_targets, axis=0)
    at_bn = jnp.take(at_b, neg_targets, axis=0)[None, :]

    # fold the rank-n_factors factorizations once per step (tiny, param-only)
    pq_emb = jnp.dot(emb_p, emb_q)                            # (H1, D)
    pq_at = jnp.dot(at_p, at_q)                               # (H1, D)

    f32, bf16 = jnp.float32, jnp.bfloat16
    args = (
        # batch-tiled (f32)
        _pad2d(src_attr, B_pad, A_pad),
        _pad2d(tgt_attr, B_pad, A_pad),
        _pad2d(plain_emb, B_pad, D_pad),
        _pad2d(attr_emb, B_pad, D_pad),
        _pad2d(pl_wt, B_pad, D_pad),
        _pad2d(pl_bt, B_pad, 1),
        _pad2d(at_wt, B_pad, D_pad),
        _pad2d(at_bt, B_pad, 1),
        (jnp.arange(B_pad) < B).astype(f32)[:, None],         # row validity mask
        # VMEM-resident weights (matmul operands in bf16, biases/masks in f32)
        _pad2d(params['enc_w1'], A_pad, H0_pad).astype(bf16),
        _pad2d(params['enc_b1'], 1, H0_pad).astype(f32),
        _pad2d(params['enc_w2'], H0_pad, H1_pad).astype(bf16),
        _pad2d(params['enc_b2'], 1, H1_pad).astype(f32),
        _pad2d(pq_emb, H1_pad, D_pad).astype(bf16),
        _pad2d(pq_at, H1_pad, D_pad).astype(bf16),
        _pad2d(pl_wn, S_pad, D_pad).astype(bf16),
        _pad2d(pl_bn, 1, S_pad).astype(f32),
        _pad2d(at_wn, S_pad, D_pad).astype(bf16),
        _pad2d(at_bn, 1, S_pad).astype(f32),
        (jnp.arange(S_pad) < S).astype(f32)[None, :],         # negative-col mask
    )

    def tiled(cols):
        return pl.BlockSpec((TB, cols), lambda i: (i, 0))

    def resident(rows, cols):
        return pl.BlockSpec((rows, cols), lambda i: (0, 0))

    in_specs = [
        tiled(A_pad), tiled(A_pad),
        tiled(D_pad), tiled(D_pad),
        tiled(D_pad), tiled(1),
        tiled(D_pad), tiled(1),
        tiled(1),
        resident(A_pad, H0_pad), resident(1, H0_pad),
        resident(H0_pad, H1_pad), resident(1, H1_pad),
        resident(H1_pad, D_pad), resident(H1_pad, D_pad),
        resident(S_pad, D_pad), resident(1, S_pad),
        resident(S_pad, D_pad), resident(1, S_pad),
        resident(1, S_pad),
    ]
    out_specs = (
        pl.BlockSpec((1, 1, LANE), lambda i: (i, 0, 0)),
        pl.BlockSpec((1, 1, LANE), lambda i: (i, 0, 0)),
    )
    out_shape = (
        jax.ShapeDtypeStruct((num_tiles, 1, LANE), f32),
        jax.ShapeDtypeStruct((num_tiles, 1, LANE), f32),
    )

    pos_part, neg_part = pl.pallas_call(
        _ige_kernel,
        out_shape=out_shape,
        grid_spec=pltpu.PrefetchScalarGridSpec(
            num_scalar_prefetch=0,
            grid=(num_tiles,),
            in_specs=in_specs,
            out_specs=out_specs,
        ),
        compiler_params=pltpu.CompilerParams(
            dimension_semantics=("parallel",),      # shards across v7x's 2 TCs
            vmem_limit_bytes=32 * 1024 * 1024,      # valid budget on v5e/v6e/v7x
        ),
    )(*args)

    # final means over the TRUE element counts (padding already masked out)
    pos_loss = jnp.sum(pos_part[:, 0, 0]) / B
    neg_loss = jnp.sum(neg_part[:, 0, 0]) / (B * S)
    return -pos_loss - neg_loss


def ige_forward_ref(params, source_x, source_y, source_attr, source_label,
                    target, target_attr, neg_targets, x2y=True):
    """Pure-JAX f32 reference with identical (assumed) semantics."""
    del source_label
    src_attr = source_attr.astype(jnp.float32)
    tgt_attr = target_attr.astype(jnp.float32)

    def encode(a):
        h = _leaky_relu(a @ params['enc_w1'] + params['enc_b1'])
        return _leaky_relu(h @ params['enc_w2'] + params['enc_b2'])

    sd, td = encode(src_attr), encode(tgt_attr)
    if x2y:
        plain = params['x_emb_E'][source_x]
        attr = params['y_emb_E'][source_y] + (sd @ params['y_emb_P']) @ params['y_emb_Q']
        sm_w, sm_b = params['x2y_W'], params['x2y_b']
        at_w, at_b = params['x2y_att_W'], params['x2y_att_b']
        at_p, at_q = params['x2y_att_P'], params['x2y_att_Q']
    else:
        plain = params['y_emb_E'][source_y]
        attr = params['x_emb_E'][source_x] + (sd @ params['x_emb_P']) @ params['x_emb_Q']
        sm_w, sm_b = params['y2x_W'], params['y2x_b']
        at_w, at_b = params['y2x_att_W'], params['y2x_att_b']
        at_p, at_q = params['y2x_att_P'], params['y2x_att_Q']

    p1 = jnp.sum(plain * sm_w[target], -1) + sm_b[target]
    n1 = plain @ sm_w[neg_targets].T + sm_b[neg_targets][None, :]
    at_t = at_w[target] + (td @ at_p) @ at_q
    p2 = jnp.sum(attr * at_t, -1) + at_b[target]
    n2 = attr @ at_w[neg_targets].T + at_b[neg_targets][None, :]
    pos_logits, neg_logits = p1 + p2, n1 + n2
    return -jnp.mean(_log_sigmoid(pos_logits)) - jnp.mean(_log_sigmoid(-neg_logits))


if __name__ == "__main__":
    # small synthetic problem
    B = 8              # batch
    x_size, y_size = 50, 60
    label_size = 5
    emb_dim = 32
    n_factors = 4
    n_raw_attrs = 16
    hidden_units = [32, 32]
    distortion = 0.75  # used only by the (host-side) unigram sampler
    n_samples = 8

    key = jax.random.PRNGKey(0)
    k_par, k_sx, k_sy, k_sa, k_lab, k_tgt, k_ta, k_neg = jax.random.split(key, 8)

    params = init_params(k_par, x_size, y_size, label_size, emb_dim,
                         n_factors, n_raw_attrs, hidden_units)

    source_x = jax.random.randint(k_sx, (B,), 0, x_size)
    source_y = jax.random.randint(k_sy, (B,), 0, y_size)
    source_attr = jax.random.normal(k_sa, (B, n_raw_attrs), jnp.float32)
    source_label = jax.random.randint(k_lab, (B,), 0, label_size)
    target = jax.random.randint(k_tgt, (B,), 0, y_size)
    target_attr = jax.random.normal(k_ta, (B, n_raw_attrs), jnp.float32)
    # UnigramSampler.sample(n_samples): host-side deterministic stand-in draw
    neg_targets = jax.random.randint(k_neg, (n_samples,), 0, y_size)

    loss = ige_forward(params, source_x, source_y, source_attr, source_label,
                       target, target_attr, neg_targets, x2y=True)
    loss = jax.block_until_ready(loss)

    loss_ref = ige_forward_ref(params, source_x, source_y, source_attr,
                               source_label, target, target_attr, neg_targets,
                               x2y=True)
    loss_ref = jax.block_until_ready(loss_ref)

    assert loss.shape == () and bool(jnp.isfinite(loss))
    # bf16 MXU operands -> loose tolerance vs the f32 reference
    assert abs(float(loss) - float(loss_ref)) < max(5e-2, 5e-2 * abs(float(loss_ref))), \
        (float(loss), float(loss_ref))
    print("KERNEL_OK")
</pallas_src>

<mosaic_0001>
module attributes {stable_mosaic.version = 11 : i64} {
  func.func @_ige_kernel(%arg0: i32, %arg1: memref<8x128xf32, #tpu.memory_space<vmem>>, %arg2: memref<8x128xf32, #tpu.memory_space<vmem>>, %arg3: memref<8x128xf32, #tpu.memory_space<vmem>>, %arg4: memref<8x128xf32, #tpu.memory_space<vmem>>, %arg5: memref<8x128xf32, #tpu.memory_space<vmem>>, %arg6: memref<8x1xf32, #tpu.memory_space<vmem>>, %arg7: memref<8x128xf32, #tpu.memory_space<vmem>>, %arg8: memref<8x1xf32, #tpu.memory_space<vmem>>, %arg9: memref<8x1xf32, #tpu.memory_space<vmem>>, %arg10: memref<128x128xbf16, #tpu.memory_space<vmem>>, %arg11: memref<1x128xf32, #tpu.memory_space<vmem>>, %arg12: memref<128x128xbf16, #tpu.memory_space<vmem>>, %arg13: memref<1x128xf32, #tpu.memory_space<vmem>>, %arg14: memref<128x128xbf16, #tpu.memory_space<vmem>>, %arg15: memref<128x128xbf16, #tpu.memory_space<vmem>>, %arg16: memref<128x128xbf16, #tpu.memory_space<vmem>>, %arg17: memref<1x128xf32, #tpu.memory_space<vmem>>, %arg18: memref<128x128xbf16, #tpu.memory_space<vmem>>, %arg19: memref<1x128xf32, #tpu.memory_space<vmem>>, %arg20: memref<1x128xf32, #tpu.memory_space<vmem>>, %arg21: memref<1x1x128xf32, #tpu.memory_space<vmem>>, %arg22: memref<1x1x128xf32, #tpu.memory_space<vmem>>) attributes {dimension_semantics = [#tpu.dimension_semantics<parallel>], iteration_bounds = array<i64: 1>, scalar_prefetch = 0 : i64, scratch_operands = 0 : i64, tpu.core_type = #tpu.core_type<tc>, window_params = [{transform_indices = @transform_0, window_bounds = array<i64: 8, 128>}, {transform_indices = @transform_1, window_bounds = array<i64: 8, 128>}, {transform_indices = @transform_2, window_bounds = array<i64: 8, 128>}, {transform_indices = @transform_3, window_bounds = array<i64: 8, 128>}, {transform_indices = @transform_4, window_bounds = array<i64: 8, 128>}, {transform_indices = @transform_5, window_bounds = array<i64: 8, 1>}, {transform_indices = @transform_6, window_bounds = array<i64: 8, 128>}, {transform_indices = @transform_7, window_bounds = array<i64: 8, 1>}, {transform_indices = @transform_8, window_bounds = array<i64: 8, 1>}, {pipeline_mode = #tpu.pipeline_mode<synchronous>, transform_indices = @transform_9, window_bounds = array<i64: 128, 128>}, {pipeline_mode = #tpu.pipeline_mode<synchronous>, transform_indices = @transform_10, window_bounds = array<i64: 1, 128>}, {pipeline_mode = #tpu.pipeline_mode<synchronous>, transform_indices = @transform_11, window_bounds = array<i64: 128, 128>}, {pipeline_mode = #tpu.pipeline_mode<synchronous>, transform_indices = @transform_12, window_bounds = array<i64: 1, 128>}, {pipeline_mode = #tpu.pipeline_mode<synchronous>, transform_indices = @transform_13, window_bounds = array<i64: 128, 128>}, {pipeline_mode = #tpu.pipeline_mode<synchronous>, transform_indices = @transform_14, window_bounds = array<i64: 128, 128>}, {pipeline_mode = #tpu.pipeline_mode<synchronous>, transform_indices = @transform_15, window_bounds = array<i64: 128, 128>}, {pipeline_mode = #tpu.pipeline_mode<synchronous>, transform_indices = @transform_16, window_bounds = array<i64: 1, 128>}, {pipeline_mode = #tpu.pipeline_mode<synchronous>, transform_indices = @transform_17, window_bounds = array<i64: 128, 128>}, {pipeline_mode = #tpu.pipeline_mode<synchronous>, transform_indices = @transform_18, window_bounds = array<i64: 1, 128>}, {pipeline_mode = #tpu.pipeline_mode<synchronous>, transform_indices = @transform_19, window_bounds = array<i64: 1, 128>}, {transform_indices = @transform_20, window_bounds = array<i64: 1, 1, 128>}, {transform_indices = @transform_21, window_bounds = array<i64: 1, 1, 128>}]} {
    %c0 = arith.constant 0 : index
    %c0_0 = arith.constant 0 : index
    %0 = vector.load %arg1[%c0, %c0_0] : memref<8x128xf32, #tpu.memory_space<vmem>>, vector<8x128xf32>
    %c0_1 = arith.constant 0 : index
    %c0_2 = arith.constant 0 : index
    %1 = vector.load %arg2[%c0_1, %c0_2] : memref<8x128xf32, #tpu.memory_space<vmem>>, vector<8x128xf32>
    %2 = tpu.concatenate %0, %1 in 0 : vector<8x128xf32>, vector<8x128xf32> -> vector<16x128xf32>
    %3 = arith.truncf %2 : vector<16x128xf32> to vector<16x128xbf16>
    %c0_3 = arith.constant 0 : index
    %c0_4 = arith.constant 0 : index
    %4 = vector.load %arg10[%c0_3, %c0_4] : memref<128x128xbf16, #tpu.memory_space<vmem>>, vector<128x128xbf16>
    %cst = arith.constant dense<0.000000e+00> : vector<16x128xf32>
    %5 = tpu.matmul %3, %4, %cst {dimension_numbers = #tpu.dot_dimension_numbers<[1], [0], [0], [1], [0, 0, 1, 1], [], []>} : vector<16x128xbf16>, vector<128x128xbf16>, vector<16x128xf32> -> vector<16x128xf32>
    %c0_5 = arith.constant 0 : index
    %c0_6 = arith.constant 0 : index
    %6 = vector.load %arg11[%c0_5, %c0_6] : memref<1x128xf32, #tpu.memory_space<vmem>>, vector<1x128xf32>
    %7 = vector.broadcast %6 : vector<1x128xf32> to vector<16x128xf32>
    %8 = arith.addf %5, %7 : vector<16x128xf32>
    %cst_7 = arith.constant 0.000000e+00 : f32
    %9 = vector.broadcast %cst_7 : f32 to vector<16x128xf32>
    %10 = arith.cmpf ogt, %8, %9 : vector<16x128xf32>
    %cst_8 = arith.constant 2.000000e-01 : f32
    %11 = vector.broadcast %cst_8 : f32 to vector<16x128xf32>
    %12 = arith.mulf %11, %8 : vector<16x128xf32>
    %13 = arith.select %10, %8, %12 : vector<16x128xi1>, vector<16x128xf32>
    %14 = arith.truncf %13 : vector<16x128xf32> to vector<16x128xbf16>
    %c0_9 = arith.constant 0 : index
    %c0_10 = arith.constant 0 : index
    %15 = vector.load %arg12[%c0_9, %c0_10] : memref<128x128xbf16, #tpu.memory_space<vmem>>, vector<128x128xbf16>
    %cst_11 = arith.constant dense<0.000000e+00> : vector<16x128xf32>
    %16 = tpu.matmul %14, %15, %cst_11 {dimension_numbers = #tpu.dot_dimension_numbers<[1], [0], [0], [1], [0, 0, 1, 1], [], []>} : vector<16x128xbf16>, vector<128x128xbf16>, vector<16x128xf32> -> vector<16x128xf32>
    %c0_12 = arith.constant 0 : index
    %c0_13 = arith.constant 0 : index
    %17 = vector.load %arg13[%c0_12, %c0_13] : memref<1x128xf32, #tpu.memory_space<vmem>>, vector<1x128xf32>
    %18 = vector.broadcast %17 : vector<1x128xf32> to vector<16x128xf32>
    %19 = arith.addf %16, %18 : vector<16x128xf32>
    %cst_14 = arith.constant 0.000000e+00 : f32
    %20 = vector.broadcast %cst_14 : f32 to vector<16x128xf32>
    %21 = arith.cmpf ogt, %19, %20 : vector<16x128xf32>
    %cst_15 = arith.constant 2.000000e-01 : f32
    %22 = vector.broadcast %cst_15 : f32 to vector<16x128xf32>
    %23 = arith.mulf %22, %19 : vector<16x128xf32>
    %24 = arith.select %21, %19, %23 : vector<16x128xi1>, vector<16x128xf32>
    %25 = vector.extract_strided_slice %24 {offsets = [0, 0], sizes = [8, 128], strides = [1, 1]} : vector<16x128xf32> to vector<8x128xf32>
    %26 = vector.extract_strided_slice %24 {offsets = [8, 0], sizes = [8, 128], strides = [1, 1]} : vector<16x128xf32> to vector<8x128xf32>
    %c0_16 = arith.constant 0 : index
    %c0_17 = arith.constant 0 : index
    %27 = vector.load %arg4[%c0_16, %c0_17] : memref<8x128xf32, #tpu.memory_space<vmem>>, vector<8x128xf32>
    %28 = arith.truncf %25 : vector<8x128xf32> to vector<8x128xbf16>
    %c0_18 = arith.constant 0 : index
    %c0_19 = arith.constant 0 : index
    %29 = vector.load %arg14[%c0_18, %c0_19] : memref<128x128xbf16, #tpu.memory_space<vmem>>, vector<128x128xbf16>
    %cst_20 = arith.constant dense<0.000000e+00> : vector<8x128xf32>
    %30 = tpu.matmul %28, %29, %cst_20 {dimension_numbers = #tpu.dot_dimension_numbers<[1], [0], [0], [1], [0, 0, 1, 1], [], []>} : vector<8x128xbf16>, vector<128x128xbf16>, vector<8x128xf32> -> vector<8x128xf32>
    %31 = arith.addf %27, %30 : vector<8x128xf32>
    %c0_21 = arith.constant 0 : index
    %c0_22 = arith.constant 0 : index
    %32 = vector.load %arg3[%c0_21, %c0_22] : memref<8x128xf32, #tpu.memory_space<vmem>>, vector<8x128xf32>
    %c0_23 = arith.constant 0 : index
    %c0_24 = arith.constant 0 : index
    %33 = vector.load %arg7[%c0_23, %c0_24] : memref<8x128xf32, #tpu.memory_space<vmem>>, vector<8x128xf32>
    %34 = arith.truncf %26 : vector<8x128xf32> to vector<8x128xbf16>
    %c0_25 = arith.constant 0 : index
    %c0_26 = arith.constant 0 : index
    %35 = vector.load %arg15[%c0_25, %c0_26] : memref<128x128xbf16, #tpu.memory_space<vmem>>, vector<128x128xbf16>
    %cst_27 = arith.constant dense<0.000000e+00> : vector<8x128xf32>
    %36 = tpu.matmul %34, %35, %cst_27 {dimension_numbers = #tpu.dot_dimension_numbers<[1], [0], [0], [1], [0, 0, 1, 1], [], []>} : vector<8x128xbf16>, vector<128x128xbf16>, vector<8x128xf32> -> vector<8x128xf32>
    %37 = arith.addf %33, %36 : vector<8x128xf32>
    %c0_28 = arith.constant 0 : index
    %c0_29 = arith.constant 0 : index
    %38 = vector.load %arg5[%c0_28, %c0_29] : memref<8x128xf32, #tpu.memory_space<vmem>>, vector<8x128xf32>
    %39 = arith.mulf %32, %38 : vector<8x128xf32>
    %cst_30 = arith.constant dense<0.000000e+00> : vector<8xf32>
    %40 = vector.multi_reduction <add>, %39, %cst_30 [1] : vector<8x128xf32> to vector<8xf32>
    %41 = vector.shape_cast %40 : vector<8xf32> to vector<8x1xf32>
    %c0_31 = arith.constant 0 : index
    %c0_32 = arith.constant 0 : index
    %42 = vector.load %arg6[%c0_31, %c0_32] : memref<8x1xf32, #tpu.memory_space<vmem>>, vector<8x1xf32>
    %43 = arith.addf %41, %42 : vector<8x1xf32>
    %44 = arith.mulf %31, %37 : vector<8x128xf32>
    %cst_33 = arith.constant dense<0.000000e+00> : vector<8xf32>
    %45 = vector.multi_reduction <add>, %44, %cst_33 [1] : vector<8x128xf32> to vector<8xf32>
    %46 = vector.shape_cast %45 : vector<8xf32> to vector<8x1xf32>
    %c0_34 = arith.constant 0 : index
    %c0_35 = arith.constant 0 : index
    %47 = vector.load %arg8[%c0_34, %c0_35] : memref<8x1xf32, #tpu.memory_space<vmem>>, vector<8x1xf32>
    %48 = arith.addf %46, %47 : vector<8x1xf32>
    %49 = arith.addf %43, %48 : vector<8x1xf32>
    %50 = arith.truncf %32 : vector<8x128xf32> to vector<8x128xbf16>
    %c0_36 = arith.constant 0 : index
    %c0_37 = arith.constant 0 : index
    %51 = vector.load %arg16[%c0_36, %c0_37] : memref<128x128xbf16, #tpu.memory_space<vmem>>, vector<128x128xbf16>
    %cst_38 = arith.constant dense<0.000000e+00> : vector<8x128xf32>
    %52 = tpu.matmul %50, %51, %cst_38 {dimension_numbers = #tpu.dot_dimension_numbers<[1], [1], [0], [0], [0, 0, 1, 0], [], []>} : vector<8x128xbf16>, vector<128x128xbf16>, vector<8x128xf32> -> vector<8x128xf32>
    %c0_39 = arith.constant 0 : index
    %c0_40 = arith.constant 0 : index
    %53 = vector.load %arg17[%c0_39, %c0_40] : memref<1x128xf32, #tpu.memory_space<vmem>>, vector<1x128xf32>
    %54 = vector.broadcast %53 : vector<1x128xf32> to vector<8x128xf32>
    %55 = arith.addf %52, %54 : vector<8x128xf32>
    %56 = arith.truncf %31 : vector<8x128xf32> to vector<8x128xbf16>
    %c0_41 = arith.constant 0 : index
    %c0_42 = arith.constant 0 : index
    %57 = vector.load %arg18[%c0_41, %c0_42] : memref<128x128xbf16, #tpu.memory_space<vmem>>, vector<128x128xbf16>
    %cst_43 = arith.constant dense<0.000000e+00> : vector<8x128xf32>
    %58 = tpu.matmul %56, %57, %cst_43 {dimension_numbers = #tpu.dot_dimension_numbers<[1], [1], [0], [0], [0, 0, 1, 0], [], []>} : vector<8x128xbf16>, vector<128x128xbf16>, vector<8x128xf32> -> vector<8x128xf32>
    %c0_44 = arith.constant 0 : index
    %c0_45 = arith.constant 0 : index
    %59 = vector.load %arg19[%c0_44, %c0_45] : memref<1x128xf32, #tpu.memory_space<vmem>>, vector<1x128xf32>
    %60 = vector.broadcast %59 : vector<1x128xf32> to vector<8x128xf32>
    %61 = arith.addf %58, %60 : vector<8x128xf32>
    %62 = arith.addf %55, %61 : vector<8x128xf32>
    %c0_46 = arith.constant 0 : index
    %c0_47 = arith.constant 0 : index
    %63 = vector.load %arg9[%c0_46, %c0_47] : memref<8x1xf32, #tpu.memory_space<vmem>>, vector<8x1xf32>
    %c0_48 = arith.constant 0 : index
    %c0_49 = arith.constant 0 : index
    %64 = vector.load %arg20[%c0_48, %c0_49] : memref<1x128xf32, #tpu.memory_space<vmem>>, vector<1x128xf32>
    %cst_50 = arith.constant 0.000000e+00 : f32
    %65 = vector.broadcast %cst_50 : f32 to vector<8x1xf32>
    %66 = arith.minimumf %49, %65 : vector<8x1xf32>
    %67 = math.absf %49 : vector<8x1xf32>
    %cst_51 = arith.constant 0.000000e+00 : f32
    %68 = vector.broadcast %cst_51 : f32 to vector<8x1xf32>
    %69 = arith.subf %68, %67 : vector<8x1xf32>
    %70 = math.exp %69 : vector<8x1xf32>
    %71 = math.log1p %70 : vector<8x1xf32>
    %72 = arith.subf %66, %71 : vector<8x1xf32>
    %73 = arith.mulf %72, %63 : vector<8x1xf32>
    %74 = vector.shape_cast %73 : vector<8x1xf32> to vector<1x8x1xf32>
    %cst_52 = arith.constant dense<0.000000e+00> : vector<1xf32>
    %75 = vector.multi_reduction <add>, %74, %cst_52 [1, 2] : vector<1x8x1xf32> to vector<1xf32>
    %76 = vector.shape_cast %75 : vector<1xf32> to vector<1x1x1xf32>
    %77 = vector.extract %76[0, 0, 0] : f32 from vector<1x1x1xf32>
    %cst_53 = arith.constant 0.000000e+00 : f32
    %78 = vector.broadcast %cst_53 : f32 to vector<8x128xf32>
    %79 = arith.subf %78, %62 : vector<8x128xf32>
    %cst_54 = arith.constant 0.000000e+00 : f32
    %80 = vector.broadcast %cst_54 : f32 to vector<8x128xf32>
    %81 = arith.minimumf %79, %80 : vector<8x128xf32>
    %82 = math.absf %79 : vector<8x128xf32>
    %cst_55 = arith.constant 0.000000e+00 : f32
    %83 = vector.broadcast %cst_55 : f32 to vector<8x128xf32>
    %84 = arith.subf %83, %82 : vector<8x128xf32>
    %85 = math.exp %84 : vector<8x128xf32>
    %86 = math.log1p %85 : vector<8x128xf32>
    %87 = arith.subf %81, %86 : vector<8x128xf32>
    %88 = vector.broadcast %63 : vector<8x1xf32> to vector<8x128xf32>
    %89 = vector.broadcast %64 : vector<1x128xf32> to vector<8x128xf32>
    %90 = arith.mulf %88, %89 : vector<8x128xf32>
    %91 = arith.mulf %87, %90 : vector<8x128xf32>
    %92 = vector.shape_cast %91 : vector<8x128xf32> to vector<1x8x128xf32>
    %cst_56 = arith.constant dense<0.000000e+00> : vector<1xf32>
    %93 = vector.multi_reduction <add>, %92, %cst_56 [1, 2] : vector<1x8x128xf32> to vector<1xf32>
    %94 = vector.shape_cast %93 : vector<1xf32> to vector<1x1x1xf32>
    %95 = vector.extract %94[0, 0, 0] : f32 from vector<1x1x1xf32>
    %96 = vector.broadcast %77 : f32 to vector<1x1x128xf32>
    %c0_57 = arith.constant 0 : index
    %c0_58 = arith.constant 0 : index
    %c0_59 = arith.constant 0 : index
    %97 = vector.load %arg21[%c0_57, %c0_58, %c0_59] : memref<1x1x128xf32, #tpu.memory_space<vmem>>, vector<1x1x128xf32>
    tpu.vector_store %arg21[%c0_57, %c0_58, %c0_59], %96 {strides = array<i32>} : memref<1x1x128xf32, #tpu.memory_space<vmem>>, vector<1x1x128xf32>,
    %98 = vector.broadcast %95 : f32 to vector<1x1x128xf32>
    %c0_60 = arith.constant 0 : index
    %c0_61 = arith.constant 0 : index
    %c0_62 = arith.constant 0 : index
    %99 = vector.load %arg22[%c0_60, %c0_61, %c0_62] : memref<1x1x128xf32, #tpu.memory_space<vmem>>, vector<1x1x128xf32>
    tpu.vector_store %arg22[%c0_60, %c0_61, %c0_62], %98 {strides = array<i32>} : memref<1x1x128xf32, #tpu.memory_space<vmem>>, vector<1x1x128xf32>,
    return
  }
  func.func @transform_0(%arg0: i32) -> (i32, i32) {
    %c0_i32 = arith.constant 0 : i32
    %c0_i32_0 = arith.constant 0 : i32
    return %arg0, %c0_i32 : i32, i32
  }
  func.func @transform_1(%arg0: i32) -> (i32, i32) {
    %c0_i32 = arith.constant 0 : i32
    %c0_i32_0 = arith.constant 0 : i32
    return %arg0, %c0_i32 : i32, i32
  }
  func.func @transform_2(%arg0: i32) -> (i32, i32) {
    %c0_i32 = arith.constant 0 : i32
    %c0_i32_0 = arith.constant 0 : i32
    return %arg0, %c0_i32 : i32, i32
  }
  func.func @transform_3(%arg0: i32) -> (i32, i32) {
    %c0_i32 = arith.constant 0 : i32
    %c0_i32_0 = arith.constant 0 : i32
    return %arg0, %c0_i32 : i32, i32
  }
  func.func @transform_4(%arg0: i32) -> (i32, i32) {
    %c0_i32 = arith.constant 0 : i32
    %c0_i32_0 = arith.constant 0 : i32
    return %arg0, %c0_i32 : i32, i32
  }
  func.func @transform_5(%arg0: i32) -> (i32, i32) {
    %c0_i32 = arith.constant 0 : i32
    %c0_i32_0 = arith.constant 0 : i32
    return %arg0, %c0_i32 : i32, i32
  }
  func.func @transform_6(%arg0: i32) -> (i32, i32) {
    %c0_i32 = arith.constant 0 : i32
    %c0_i32_0 = arith.constant 0 : i32
    return %arg0, %c0_i32 : i32, i32
  }
  func.func @transform_7(%arg0: i32) -> (i32, i32) {
    %c0_i32 = arith.constant 0 : i32
    %c0_i32_0 = arith.constant 0 : i32
    return %arg0, %c0_i32 : i32, i32
  }
  func.func @transform_8(%arg0: i32) -> (i32, i32) {
    %c0_i32 = arith.constant 0 : i32
    %c0_i32_0 = arith.constant 0 : i32
    return %arg0, %c0_i32 : i32, i32
  }
  func.func @transform_9(%arg0: i32) -> (i32, i32) {
    %c0_i32 = arith.constant 0 : i32
    %c0_i32_0 = arith.constant 0 : i32
    %c0_i32_1 = arith.constant 0 : i32
    return %c0_i32, %c0_i32_0 : i32, i32
  }
  func.func @transform_10(%arg0: i32) -> (i32, i32) {
    %c0_i32 = arith.constant 0 : i32
    %c0_i32_0 = arith.constant 0 : i32
    %c0_i32_1 = arith.constant 0 : i32
    return %c0_i32, %c0_i32_0 : i32, i32
  }
  func.func @transform_11(%arg0: i32) -> (i32, i32) {
    %c0_i32 = arith.constant 0 : i32
    %c0_i32_0 = arith.constant 0 : i32
    %c0_i32_1 = arith.constant 0 : i32
    return %c0_i32, %c0_i32_0 : i32, i32
  }
  func.func @transform_12(%arg0: i32) -> (i32, i32) {
    %c0_i32 = arith.constant 0 : i32
    %c0_i32_0 = arith.constant 0 : i32
    %c0_i32_1 = arith.constant 0 : i32
    return %c0_i32, %c0_i32_0 : i32, i32
  }
  func.func @transform_13(%arg0: i32) -> (i32, i32) {
    %c0_i32 = arith.constant 0 : i32
    %c0_i32_0 = arith.constant 0 : i32
    %c0_i32_1 = arith.constant 0 : i32
    return %c0_i32, %c0_i32_0 : i32, i32
  }
  func.func @transform_14(%arg0: i32) -> (i32, i32) {
    %c0_i32 = arith.constant 0 : i32
    %c0_i32_0 = arith.constant 0 : i32
    %c0_i32_1 = arith.constant 0 : i32
    return %c0_i32, %c0_i32_0 : i32, i32
  }
  func.func @transform_15(%arg0: i32) -> (i32, i32) {
    %c0_i32 = arith.constant 0 : i32
    %c0_i32_0 = arith.constant 0 : i32
    %c0_i32_1 = arith.constant 0 : i32
    return %c0_i32, %c0_i32_0 : i32, i32
  }
  func.func @transform_16(%arg0: i32) -> (i32, i32) {
    %c0_i32 = arith.constant 0 : i32
    %c0_i32_0 = arith.constant 0 : i32
    %c0_i32_1 = arith.constant 0 : i32
    return %c0_i32, %c0_i32_0 : i32, i32
  }
  func.func @transform_17(%arg0: i32) -> (i32, i32) {
    %c0_i32 = arith.constant 0 : i32
    %c0_i32_0 = arith.constant 0 : i32
    %c0_i32_1 = arith.constant 0 : i32
    return %c0_i32, %c0_i32_0 : i32, i32
  }
  func.func @transform_18(%arg0: i32) -> (i32, i32) {
    %c0_i32 = arith.constant 0 : i32
    %c0_i32_0 = arith.constant 0 : i32
    %c0_i32_1 = arith.constant 0 : i32
    return %c0_i32, %c0_i32_0 : i32, i32
  }
  func.func @transform_19(%arg0: i32) -> (i32, i32) {
    %c0_i32 = arith.constant 0 : i32
    %c0_i32_0 = arith.constant 0 : i32
    %c0_i32_1 = arith.constant 0 : i32
    return %c0_i32, %c0_i32_0 : i32, i32
  }
  func.func @transform_20(%arg0: i32) -> (i32, i32, i32) {
    %c0_i32 = arith.constant 0 : i32
    %c0_i32_0 = arith.constant 0 : i32
    %c0_i32_1 = arith.constant 0 : i32
    return %arg0, %c0_i32, %c0_i32_0 : i32, i32, i32
  }
  func.func @transform_21(%arg0: i32) -> (i32, i32, i32) {
    %c0_i32 = arith.constant 0 : i32
    %c0_i32_0 = arith.constant 0 : i32
    %c0_i32_1 = arith.constant 0 : i32
    return %arg0, %c0_i32, %c0_i32_0 : i32, i32, i32
  }
}

</mosaic_0001>

<llo_original>
// kernel: ige_forward.1
$region0: #{ige_forward.1}
  #allocation0 [shape = 'u32[]', space=smem, size = 0x4, offset = 0x4, fixed_abs, tag = 'smem constant byte address 0x4 - core index']
  #allocation1 [shape = 'u32[144,128]{1,0:T(1,128)}', space=vmem, size = 0x12000, scoped, tag = 'internal scratch']
  %s0 = inlined_call_operand.vmem [shape: f32[8,128], index: 0, kind: input, shape index: {}]
  %s1 = inlined_call_operand.vmem [shape: f32[8,128], index: 1, kind: input, shape index: {}]
  %s2 = inlined_call_operand.vmem [shape: f32[8,128], index: 2, kind: input, shape index: {}]
  %s3 = inlined_call_operand.vmem [shape: f32[8,128], index: 3, kind: input, shape index: {}]
  %s4 = inlined_call_operand.vmem [shape: f32[8,128], index: 4, kind: input, shape index: {}]
  %s5 = inlined_call_operand.vmem [shape: f32[8,1], index: 5, kind: input, shape index: {}]
  %s6 = inlined_call_operand.vmem [shape: f32[8,128], index: 6, kind: input, shape index: {}]
  %s7 = inlined_call_operand.vmem [shape: f32[8,1], index: 7, kind: input, shape index: {}]
  %s8 = inlined_call_operand.vmem [shape: f32[8,1], index: 8, kind: input, shape index: {}]
  %s9 = inlined_call_operand.vmem [shape: bf16[128,128], index: 9, kind: input, shape index: {}]
  %s10 = inlined_call_operand.vmem [shape: f32[1,128], index: 10, kind: input, shape index: {}]
  %s11 = inlined_call_operand.vmem [shape: bf16[128,128], index: 11, kind: input, shape index: {}]
  %s12 = inlined_call_operand.vmem [shape: f32[1,128], index: 12, kind: input, shape index: {}]
  %s13 = inlined_call_operand.vmem [shape: bf16[128,128], index: 13, kind: input, shape index: {}]
  %s14 = inlined_call_operand.vmem [shape: bf16[128,128], index: 14, kind: input, shape index: {}]
  %s15 = inlined_call_operand.vmem [shape: bf16[128,128], index: 15, kind: input, shape index: {}]
  %s16 = inlined_call_operand.vmem [shape: f32[1,128], index: 16, kind: input, shape index: {}]
  %s17 = inlined_call_operand.vmem [shape: bf16[128,128], index: 17, kind: input, shape index: {}]
  %s18 = inlined_call_operand.vmem [shape: f32[1,128], index: 18, kind: input, shape index: {}]
  %s19 = inlined_call_operand.vmem [shape: f32[1,128], index: 19, kind: input, shape index: {}]
  %s20 = inlined_call_operand.vmem [shape: f32[1,1,128], index: 20, kind: output, shape index: {0}]
  %s21 = inlined_call_operand.vmem [shape: f32[1,1,128], index: 21, kind: output, shape index: {1}]
  %22 = xla_tuple %s20, %s21
  %s23 = sld [smem:[#allocation0]]
  $region98: #{ige_forward.1} parent=0
    _
  %s25 = ssub.s32 1, %s23
  %s26 = scalar_select 0, %s25, %s23
  // Predicated region
  $region2: #{ige_forward.1} parent=0 // pred_check
    _
  $region3: #{ige_forward.1} parent=0 // pred_check_branch
    %28 = sbr.rel (0) target = $region5
  $region4: #{ige_forward.1} parent=0 // pred_region
    _
  $region5: #{ige_forward.1} parent=0 // pred_fallthru
    _
  // Predicated region
  $region6: #{ige_forward.1} parent=0 // pred_check
    _
  $region7: #{ige_forward.1} parent=0 // pred_check_branch
    %30 = sbr.rel (0) target = $region9
  $region8: #{ige_forward.1} parent=0 // pred_region
    _
  $region9: #{ige_forward.1} parent=0 // pred_fallthru
    _
  // Predicated region
  $region10: #{ige_forward.1} parent=0 // pred_check
    _
  $region11: #{ige_forward.1} parent=0 // pred_check_branch
    %32 = sbr.rel (0) target = $region13
  $region12: #{ige_forward.1} parent=0 // pred_region
    _
  $region13: #{ige_forward.1} parent=0 // pred_fallthru
    _
  // Predicated region
  $region14: #{ige_forward.1} parent=0 // pred_check
    _
  $region15: #{ige_forward.1} parent=0 // pred_check_branch
    %34 = sbr.rel (0) target = $region17
  $region16: #{ige_forward.1} parent=0 // pred_region
    _
  $region17: #{ige_forward.1} parent=0 // pred_fallthru
    _
  // Predicated region
  $region18: #{ige_forward.1} parent=0 // pred_check
    _
  $region19: #{ige_forward.1} parent=0 // pred_check_branch
    %36 = sbr.rel (0) target = $region21
  $region20: #{ige_forward.1} parent=0 // pred_region
    _
  $region21: #{ige_forward.1} parent=0 // pred_fallthru
    _
  // Predicated region
  $region22: #{ige_forward.1} parent=0 // pred_check
    _
  $region23: #{ige_forward.1} parent=0 // pred_check_branch
    %38 = sbr.rel (0) target = $region25
  $region24: #{ige_forward.1} parent=0 // pred_region
    _
  $region25: #{ige_forward.1} parent=0 // pred_fallthru
    _
  // Predicated region
  $region26: #{ige_forward.1} parent=0 // pred_check
    _
  $region27: #{ige_forward.1} parent=0 // pred_check_branch
    %40 = sbr.rel (0) target = $region29
  $region28: #{ige_forward.1} parent=0 // pred_region
    _
  $region29: #{ige_forward.1} parent=0 // pred_fallthru
    _
  // Predicated region
  $region30: #{ige_forward.1} parent=0 // pred_check
    _
  $region31: #{ige_forward.1} parent=0 // pred_check_branch
    %42 = sbr.rel (0) target = $region33
  $region32: #{ige_forward.1} parent=0 // pred_region
    _
  $region33: #{ige_forward.1} parent=0 // pred_fallthru
    _
  // Predicated region
  $region34: #{ige_forward.1} parent=0 // pred_check
    _
  $region35: #{ige_forward.1} parent=0 // pred_check_branch
    %44 = sbr.rel (0) target = $region37
  $region36: #{ige_forward.1} parent=0 // pred_region
    _
  $region37: #{ige_forward.1} parent=0 // pred_fallthru
    _
  // Predicated region
  $region38: #{ige_forward.1} parent=0 // pred_check
    _
  $region39: #{ige_forward.1} parent=0 // pred_check_branch
    %46 = sbr.rel (0) target = $region41
  $region40: #{ige_forward.1} parent=0 // pred_region
    _
  $region41: #{ige_forward.1} parent=0 // pred_fallthru
    _
  // Predicated region
  $region42: #{ige_forward.1} parent=0 // pred_check
    _
  $region43: #{ige_forward.1} parent=0 // pred_check_branch
    %48 = sbr.rel (0) target = $region45
  $region44: #{ige_forward.1} parent=0 // pred_region
    _
  $region45: #{ige_forward.1} parent=0 // pred_fallthru
    _
  // Predicated region
  $region46: #{ige_forward.1} parent=0 // pred_check
    _
  $region47: #{ige_forward.1} parent=0 // pred_check_branch
    %50 = sbr.rel (0) target = $region49
  $region48: #{ige_forward.1} parent=0 // pred_region
    _
  $region49: #{ige_forward.1} parent=0 // pred_fallthru
    _
  // Predicated region
  $region50: #{ige_forward.1} parent=0 // pred_check
    _
  $region51: #{ige_forward.1} parent=0 // pred_check_branch
    %52 = sbr.rel (0) target = $region53
  $region52: #{ige_forward.1} parent=0 // pred_region
    _
  $region53: #{ige_forward.1} parent=0 // pred_fallthru
    _
  // Predicated region
  $region54: #{ige_forward.1} parent=0 // pred_check
    _
  $region55: #{ige_forward.1} parent=0 // pred_check_branch
    %54 = sbr.rel (0) target = $region57
  $region56: #{ige_forward.1} parent=0 // pred_region
    _
  $region57: #{ige_forward.1} parent=0 // pred_fallthru
    _
  // Predicated region
  $region58: #{ige_forward.1} parent=0 // pred_check
    _
  $region59: #{ige_forward.1} parent=0 // pred_check_branch
    %56 = sbr.rel (0) target = $region61
  $region60: #{ige_forward.1} parent=0 // pred_region
    _
  $region61: #{ige_forward.1} parent=0 // pred_fallthru
    _
  // Predicated region
  $region62: #{ige_forward.1} parent=0 // pred_check
    _
  $region63: #{ige_forward.1} parent=0 // pred_check_branch
    %58 = sbr.rel (0) target = $region65
  $region64: #{ige_forward.1} parent=0 // pred_region
    _
  $region65: #{ige_forward.1} parent=0 // pred_fallthru
    _
  // Predicated region
  $region66: #{ige_forward.1} parent=0 // pred_check
    _
  $region67: #{ige_forward.1} parent=0 // pred_check_branch
    %60 = sbr.rel (0) target = $region69
  $region68: #{ige_forward.1} parent=0 // pred_region
    _
  $region69: #{ige_forward.1} parent=0 // pred_fallthru
    _
  // Predicated region
  $region70: #{ige_forward.1} parent=0 // pred_check
    _
  $region71: #{ige_forward.1} parent=0 // pred_check_branch
    %62 = sbr.rel (0) target = $region73
  $region72: #{ige_forward.1} parent=0 // pred_region
    _
  $region73: #{ige_forward.1} parent=0 // pred_fallthru
    _
  // Predicated region
  $region74: #{ige_forward.1} parent=0 // pred_check
    _
  $region75: #{ige_forward.1} parent=0 // pred_check_branch
    %64 = sbr.rel (0) target = $region77
  $region76: #{ige_forward.1} parent=0 // pred_region
    _
  $region77: #{ige_forward.1} parent=0 // pred_fallthru
    _
  // Predicated region
  $region78: #{ige_forward.1} parent=0 // pred_check
    _
  $region79: #{ige_forward.1} parent=0 // pred_check_branch
    %66 = sbr.rel (0) target = $region81
  $region80: #{ige_forward.1} parent=0 // pred_region
    _
  $region81: #{ige_forward.1} parent=0 // pred_fallthru
    _
  %v68 = vld [vmem:[%s0] sm:$0xff]
  %v69 = vld [vmem:[%s1] sm:$0xff]
  %v70 = vpack.c.bf16 %v69, %v68
  %v71 = vld [vmem:[%s9] sm:$0xf]
  %v72 = vld [vmem:[%s9 + $0x4] sm:$0xf]
  %v73 = vld [vmem:[%s9 + $0x8] sm:$0xf]
  %v74 = vld [vmem:[%s9 + $0xc] sm:$0xf]
  %v75 = vld [vmem:[%s9 + $0x10] sm:$0xf]
  %v76 = vld [vmem:[%s9 + $0x14] sm:$0xf]
  %v77 = vld [vmem:[%s9 + $0x18] sm:$0xf]
  %v78 = vld [vmem:[%s9 + $0x1c] sm:$0xf]
  %v79 = vld [vmem:[%s9 + $0x20] sm:$0xf]
  %v80 = vld [vmem:[%s9 + $0x24] sm:$0xf]
  %v81 = vld [vmem:[%s9 + $0x28] sm:$0xf]
  %v82 = vld [vmem:[%s9 + $0x2c] sm:$0xf]
  %v83 = vld [vmem:[%s9 + $0x30] sm:$0xf]
  %v84 = vld [vmem:[%s9 + $0x34] sm:$0xf]
  %v85 = vld [vmem:[%s9 + $0x38] sm:$0xf]
  %v86 = vld [vmem:[%s9 + $0x3c] sm:$0xf]
  %v87 = vld [vmem:[%s10] sm:$0x1]
  %v89 = vlaneseq
  %v90 = vshrl.u32 %v89, 7
  %v91 = vsub.s32 0, %v90
  %v92 = vrot.slane %v87, %v91
  %v110 = vunpack.c.l.b16 %v71
  %v111 = vunpack.c.l.b16 %v72
  %v112 = vunpack.c.l.b16 %v73
  %v113 = vunpack.c.l.b16 %v74
  %v114 = vunpack.c.l.b16 %v75
  %v115 = vunpack.c.l.b16 %v76
  %v116 = vunpack.c.l.b16 %v77
  %v117 = vunpack.c.l.b16 %v78
  %v118 = vunpack.c.l.b16 %v79
  %v119 = vunpack.c.l.b16 %v80
  %v120 = vunpack.c.l.b16 %v81
  %v121 = vunpack.c.l.b16 %v82
  %v122 = vunpack.c.l.b16 %v83
  %v123 = vunpack.c.l.b16 %v84
  %v124 = vunpack.c.l.b16 %v85
  %v125 = vunpack.c.l.b16 %v86
  %v126 = vpack.c.b16 %v111, %v110
  %v127 = vpack.c.b16 %v113, %v112
  %v128 = vpack.c.b16 %v115, %v114
  %v129 = vpack.c.b16 %v117, %v116
  %v130 = vpack.c.b16 %v119, %v118
  %v131 = vpack.c.b16 %v121, %v120
  %v132 = vpack.c.b16 %v123, %v122
  %v133 = vpack.c.b16 %v125, %v124
  %142 = vmatprep.subr.bf16.mxu0 0
  %143 = vmatpush1.bf16.msra.mxu0 %v126
  %144 = vmatprep.subr.bf16.mxu0 0
  %145 = vmatpush1.bf16.msra.mxu0 %v127
  %146 = vmatprep.subr.bf16.mxu0 0
  %147 = vmatpush1.bf16.msra.mxu0 %v128
  %148 = vmatprep.subr.bf16.mxu0 0
  %149 = vmatpush1.bf16.msra.mxu0 %v129
  %150 = vmatprep.subr.bf16.mxu0 0
  %151 = vmatpush1.bf16.msra.mxu0 %v130
  %152 = vmatprep.subr.bf16.mxu0 0
  %153 = vmatpush1.bf16.msra.mxu0 %v131
  %154 = vmatprep.subr.bf16.mxu0 0
  %155 = vmatpush1.bf16.msra.mxu0 %v132
  %156 = vmatprep.subr.bf16.mxu0 0
  %157 = vmatpush1.bf16.msra.mxu0 %v133
  %158 = vmatprep.subr.bf16.mxu0 0
  %159 = vmatpush1.bf16.msra.mxu0 0
  %160 = vmatprep.subr.bf16.mxu0 0
  %161 = vmatpush1.bf16.msra.mxu0 0
  %162 = vmatprep.subr.bf16.mxu0 0
  %163 = vmatpush1.bf16.msra.mxu0 0
  %164 = vmatprep.subr.bf16.mxu0 0
  %165 = vmatpush1.bf16.msra.mxu0 0
  %166 = vmatprep.subr.bf16.mxu0 0
  %167 = vmatpush1.bf16.msra.mxu0 0
  %168 = vmatprep.subr.bf16.mxu0 0
  %169 = vmatpush1.bf16.msra.mxu0 0
  %170 = vmatprep.subr.bf16.mxu0 0
  %171 = vmatpush1.bf16.msra.mxu0 0
  %172 = vmatprep.subr.bf16.mxu0 0
  %173 = vmatpush1.bf16.msra.mxu0 0
  %174 = vmatprep.mubr.bf16.mxu0 0
  %175 = vmatmul.mubr.bf16.gmra.mrb[0].mxu0 %v70
  %v176 = vpop.f32.mrb[0].mxu0
  %v177 = vadd.f32 %v92, %v176
  %v178 = vpop.f32.mrb[0].mxu0
  %v179 = vpop.f32.mrb[0].mxu0
  %v180 = vadd.f32 %v92, %v179
  %v181 = vpop.f32.mrb[0].mxu0
  %182 = vdwg.mxu0
  %vm183 = vcmp.gt.f32.partialorder %v177, 0.0
  %vm184 = vcmp.gt.f32.partialorder %v180, 0.0
  %v185 = vmul.f32 %v177, 0.2
  %v186 = vmul.f32 %v180, 0.2
  %v187 = vsel %vm183, %v177, %v185
  %v188 = vsel %vm184, %v180, %v186
  %v189 = vpack.c.bf16 %v188, %v187
  %v190 = vld [vmem:[%s11] sm:$0xf]
  %v191 = vld [vmem:[%s11 + $0x4] sm:$0xf]
  %v192 = vld [vmem:[%s11 + $0x8] sm:$0xf]
  %v193 = vld [vmem:[%s11 + $0xc] sm:$0xf]
  %v194 = vld [vmem:[%s11 + $0x10] sm:$0xf]
  %v195 = vld [vmem:[%s11 + $0x14] sm:$0xf]
  %v196 = vld [vmem:[%s11 + $0x18] sm:$0xf]
  %v197 = vld [vmem:[%s11 + $0x1c] sm:$0xf]
  %v198 = vld [vmem:[%s11 + $0x20] sm:$0xf]
  %v199 = vld [vmem:[%s11 + $0x24] sm:$0xf]
  %v200 = vld [vmem:[%s11 + $0x28] sm:$0xf]
  %v201 = vld [vmem:[%s11 + $0x2c] sm:$0xf]
  %v202 = vld [vmem:[%s11 + $0x30] sm:$0xf]
  %v203 = vld [vmem:[%s11 + $0x34] sm:$0xf]
  %v204 = vld [vmem:[%s11 + $0x38] sm:$0xf]
  %v205 = vld [vmem:[%s11 + $0x3c] sm:$0xf]
  %v206 = vld [vmem:[%s12] sm:$0x1]
  %v208 = vlaneseq
  %v209 = vshrl.u32 %v208, 7
  %v210 = vsub.s32 0, %v209
  %v211 = vrot.slane %v206, %v210
  %v229 = vunpack.c.l.b16 %v190
  %v230 = vunpack.c.l.b16 %v191
  %v231 = vunpack.c.l.b16 %v192
  %v232 = vunpack.c.l.b16 %v193
  %v233 = vunpack.c.l.b16 %v194
  %v234 = vunpack.c.l.b16 %v195
  %v235 = vunpack.c.l.b16 %v196
  %v236 = vunpack.c.l.b16 %v197
  %v237 = vunpack.c.l.b16 %v198
  %v238 = vunpack.c.l.b16 %v199
  %v239 = vunpack.c.l.b16 %v200
  %v240 = vunpack.c.l.b16 %v201
  %v241 = vunpack.c.l.b16 %v202
  %v242 = vunpack.c.l.b16 %v203
  %v243 = vunpack.c.l.b16 %v204
  %v244 = vunpack.c.l.b16 %v205
  %v245 = vpack.c.b16 %v230, %v229
  %v246 = vpack.c.b16 %v232, %v231
  %v247 = vpack.c.b16 %v234, %v233
  %v248 = vpack.c.b16 %v236, %v235
  %v249 = vpack.c.b16 %v238, %v237
  %v250 = vpack.c.b16 %v240, %v239
  %v251 = vpack.c.b16 %v242, %v241
  %v252 = vpack.c.b16 %v244, %v243
  %261 = vmatprep.subr.bf16.mxu0 0
  %262 = vmatpush1.bf16.msra.mxu0 %v245
  %263 = vmatprep.subr.bf16.mxu0 0
  %264 = vmatpush1.bf16.msra.mxu0 %v246
  %265 = vmatprep.subr.bf16.mxu0 0
  %266 = vmatpush1.bf16.msra.mxu0 %v247
  %267 = vmatprep.subr.bf16.mxu0 0
  %268 = vmatpush1.bf16.msra.mxu0 %v248
  %269 = vmatprep.subr.bf16.mxu0 0
  %270 = vmatpush1.bf16.msra.mxu0 %v249
  %271 = vmatprep.subr.bf16.mxu0 0
  %272 = vmatpush1.bf16.msra.mxu0 %v250
  %273 = vmatprep.subr.bf16.mxu0 0
  %274 = vmatpush1.bf16.msra.mxu0 %v251
  %275 = vmatprep.subr.bf16.mxu0 0
  %276 = vmatpush1.bf16.msra.mxu0 %v252
  %277 = vmatprep.subr.bf16.mxu0 0
  %278 = vmatpush1.bf16.msra.mxu0 0
  %279 = vmatprep.subr.bf16.mxu0 0
  %280 = vmatpush1.bf16.msra.mxu0 0
  %281 = vmatprep.subr.bf16.mxu0 0
  %282 = vmatpush1.bf16.msra.mxu0 0
  %283 = vmatprep.subr.bf16.mxu0 0
  %284 = vmatpush1.bf16.msra.mxu0 0
  %285 = vmatprep.subr.bf16.mxu0 0
  %286 = vmatpush1.bf16.msra.mxu0 0
  %287 = vmatprep.subr.bf16.mxu0 0
  %288 = vmatpush1.bf16.msra.mxu0 0
  %289 = vmatprep.subr.bf16.mxu0 0
  %290 = vmatpush1.bf16.msra.mxu0 0
  %291 = vmatprep.subr.bf16.mxu0 0
  %292 = vmatpush1.bf16.msra.mxu0 0
  %293 = vmatprep.mubr.bf16.mxu0 0
  %294 = vmatmul.mubr.bf16.gmra.mrb[0].mxu0 %v189
  %v295 = vpop.f32.mrb[0].mxu0
  %v296 = vadd.f32 %v211, %v295
  %v297 = vpop.f32.mrb[0].mxu0
  %v298 = vpop.f32.mrb[0].mxu0
  %v299 = vadd.f32 %v211, %v298
  %v300 = vpop.f32.mrb[0].mxu0
  %301 = vdwg.mxu0
  %vm302 = vcmp.gt.f32.partialorder %v296, 0.0
  %vm303 = vcmp.gt.f32.partialorder %v299, 0.0
  %v304 = vmul.f32 %v296, 0.2
  %v305 = vmul.f32 %v299, 0.2
  %v306 = vsel %vm302, %v296, %v304
  %v307 = vsel %vm303, %v299, %v305
  %v308 = vld [vmem:[%s3] sm:$0xff]
  %v309 = vpack.c.bf16 %v306, %v306
  %v310 = vld [vmem:[%s13] sm:$0xf]
  %v311 = vld [vmem:[%s13 + $0x4] sm:$0xf]
  %v312 = vld [vmem:[%s13 + $0x8] sm:$0xf]
  %v313 = vld [vmem:[%s13 + $0xc] sm:$0xf]
  %v314 = vld [vmem:[%s13 + $0x10] sm:$0xf]
  %v315 = vld [vmem:[%s13 + $0x14] sm:$0xf]
  %v316 = vld [vmem:[%s13 + $0x18] sm:$0xf]
  %v317 = vld [vmem:[%s13 + $0x1c] sm:$0xf]
  %v318 = vld [vmem:[%s13 + $0x20] sm:$0xf]
  %v319 = vld [vmem:[%s13 + $0x24] sm:$0xf]
  %v320 = vld [vmem:[%s13 + $0x28] sm:$0xf]
  %v321 = vld [vmem:[%s13 + $0x2c] sm:$0xf]
  %v322 = vld [vmem:[%s13 + $0x30] sm:$0xf]
  %v323 = vld [vmem:[%s13 + $0x34] sm:$0xf]
  %v324 = vld [vmem:[%s13 + $0x38] sm:$0xf]
  %v325 = vld [vmem:[%s13 + $0x3c] sm:$0xf]
  %v342 = vunpack.c.l.b16 %v310
  %v343 = vunpack.c.l.b16 %v311
  %v344 = vunpack.c.l.b16 %v312
  %v345 = vunpack.c.l.b16 %v313
  %v346 = vunpack.c.l.b16 %v314
  %v347 = vunpack.c.l.b16 %v315
  %v348 = vunpack.c.l.b16 %v316
  %v349 = vunpack.c.l.b16 %v317
  %v350 = vunpack.c.l.b16 %v318
  %v351 = vunpack.c.l.b16 %v319
  %v352 = vunpack.c.l.b16 %v320
  %v353 = vunpack.c.l.b16 %v321
  %v354 = vunpack.c.l.b16 %v322
  %v355 = vunpack.c.l.b16 %v323
  %v356 = vunpack.c.l.b16 %v324
  %v357 = vunpack.c.l.b16 %v325
  %v358 = vpack.c.b16 %v343, %v342
  %v359 = vpack.c.b16 %v345, %v344
  %v360 = vpack.c.b16 %v347, %v346
  %v361 = vpack.c.b16 %v349, %v348
  %v362 = vpack.c.b16 %v351, %v350
  %v363 = vpack.c.b16 %v353, %v352
  %v364 = vpack.c.b16 %v355, %v354
  %v365 = vpack.c.b16 %v357, %v356
  %374 = vmatprep.subr.bf16.mxu0 0
  %375 = vmatpush1.bf16.msra.mxu0 %v358
  %376 = vmatprep.subr.bf16.mxu0 0
  %377 = vmatpush1.bf16.msra.mxu0 %v359
  %378 = vmatprep.subr.bf16.mxu0 0
  %379 = vmatpush1.bf16.msra.mxu0 %v360
  %380 = vmatprep.subr.bf16.mxu0 0
  %381 = vmatpush1.bf16.msra.mxu0 %v361
  %382 = vmatprep.subr.bf16.mxu0 0
  %383 = vmatpush1.bf16.msra.mxu0 %v362
  %384 = vmatprep.subr.bf16.mxu0 0
  %385 = vmatpush1.bf16.msra.mxu0 %v363
  %386 = vmatprep.subr.bf16.mxu0 0
  %387 = vmatpush1.bf16.msra.mxu0 %v364
  %388 = vmatprep.subr.bf16.mxu0 0
  %389 = vmatpush1.bf16.msra.mxu0 %v365
  %390 = vmatprep.subr.bf16.mxu0 0
  %391 = vmatpush1.bf16.msra.mxu0 0
  %392 = vmatprep.subr.bf16.mxu0 0
  %393 = vmatpush1.bf16.msra.mxu0 0
  %394 = vmatprep.subr.bf16.mxu0 0
  %395 = vmatpush1.bf16.msra.mxu0 0
  %396 = vmatprep.subr.bf16.mxu0 0
  %397 = vmatpush1.bf16.msra.mxu0 0
  %398 = vmatprep.subr.bf16.mxu0 0
  %399 = vmatpush1.bf16.msra.mxu0 0
  %400 = vmatprep.subr.bf16.mxu0 0
  %401 = vmatpush1.bf16.msra.mxu0 0
  %402 = vmatprep.subr.bf16.mxu0 0
  %403 = vmatpush1.bf16.msra.mxu0 0
  %404 = vmatprep.subr.bf16.mxu0 0
  %405 = vmatpush1.bf16.msra.mxu0 0
  %406 = vmatprep.mubr.bf16.mxu0 0
  %407 = vmatmul.mubr.bf16.gmra.mrb[0].mxu0 %v309
  %v408 = vpop.f32.mrb[0].mxu0
  %v409 = vadd.f32 0.0, %v408
  %v410 = vpop.f32.mrb[0].mxu0
  %v411 = vpop.f32.mrb[0].mxu0
  %v412 = vpop.f32.mrb[0].mxu0
  %413 = vdwg.mxu0
  %v414 = vadd.f32 %v308, %v409
  %v415 = vld [vmem:[%s2] sm:$0xff]
  %v416 = vld [vmem:[%s6] sm:$0xff]
  %v417 = vpack.c.bf16 %v307, %v307
  %v418 = vld [vmem:[%s14] sm:$0xf]
  %v419 = vld [vmem:[%s14 + $0x4] sm:$0xf]
  %v420 = vld [vmem:[%s14 + $0x8] sm:$0xf]
  %v421 = vld [vmem:[%s14 + $0xc] sm:$0xf]
  %v422 = vld [vmem:[%s14 + $0x10] sm:$0xf]
  %v423 = vld [vmem:[%s14 + $0x14] sm:$0xf]
  %v424 = vld [vmem:[%s14 + $0x18] sm:$0xf]
  %v425 = vld [vmem:[%s14 + $0x1c] sm:$0xf]
  %v426 = vld [vmem:[%s14 + $0x20] sm:$0xf]
  %v427 = vld [vmem:[%s14 + $0x24] sm:$0xf]
  %v428 = vld [vmem:[%s14 + $0x28] sm:$0xf]
  %v429 = vld [vmem:[%s14 + $0x2c] sm:$0xf]
  %v430 = vld [vmem:[%s14 + $0x30] sm:$0xf]
  %v431 = vld [vmem:[%s14 + $0x34] sm:$0xf]
  %v432 = vld [vmem:[%s14 + $0x38] sm:$0xf]
  %v433 = vld [vmem:[%s14 + $0x3c] sm:$0xf]
  %v450 = vunpack.c.l.b16 %v418
  %v451 = vunpack.c.l.b16 %v419
  %v452 = vunpack.c.l.b16 %v420
  %v453 = vunpack.c.l.b16 %v421
  %v454 = vunpack.c.l.b16 %v422
  %v455 = vunpack.c.l.b16 %v423
  %v456 = vunpack.c.l.b16 %v424
  %v457 = vunpack.c.l.b16 %v425
  %v458 = vunpack.c.l.b16 %v426
  %v459 = vunpack.c.l.b16 %v427
  %v460 = vunpack.c.l.b16 %v428
  %v461 = vunpack.c.l.b16 %v429
  %v462 = vunpack.c.l.b16 %v430
  %v463 = vunpack.c.l.b16 %v431
  %v464 = vunpack.c.l.b16 %v432
  %v465 = vunpack.c.l.b16 %v433
  %v466 = vpack.c.b16 %v451, %v450
  %v467 = vpack.c.b16 %v453, %v452
  %v468 = vpack.c.b16 %v455, %v454
  %v469 = vpack.c.b16 %v457, %v456
  %v470 = vpack.c.b16 %v459, %v458
  %v471 = vpack.c.b16 %v461, %v460
  %v472 = vpack.c.b16 %v463, %v462
  %v473 = vpack.c.b16 %v465, %v464
  %482 = vmatprep.subr.bf16.mxu0 0
  %483 = vmatpush1.bf16.msra.mxu0 %v466
  %484 = vmatprep.subr.bf16.mxu0 0
  %485 = vmatpush1.bf16.msra.mxu0 %v467
  %486 = vmatprep.subr.bf16.mxu0 0
  %487 = vmatpush1.bf16.msra.mxu0 %v468
  %488 = vmatprep.subr.bf16.mxu0 0
  %489 = vmatpush1.bf16.msra.mxu0 %v469
  %490 = vmatprep.subr.bf16.mxu0 0
  %491 = vmatpush1.bf16.msra.mxu0 %v470
  %492 = vmatprep.subr.bf16.mxu0 0
  %493 = vmatpush1.bf16.msra.mxu0 %v471
  %494 = vmatprep.subr.bf16.mxu0 0
  %495 = vmatpush1.bf16.msra.mxu0 %v472
  %496 = vmatprep.subr.bf16.mxu0 0
  %497 = vmatpush1.bf16.msra.mxu0 %v473
  %498 = vmatprep.subr.bf16.mxu0 0
  %499 = vmatpush1.bf16.msra.mxu0 0
  %500 = vmatprep.subr.bf16.mxu0 0
  %501 = vmatpush1.bf16.msra.mxu0 0
  %502 = vmatprep.subr.bf16.mxu0 0
  %503 = vmatpush1.bf16.msra.mxu0 0
  %504 = vmatprep.subr.bf16.mxu0 0
  %505 = vmatpush1.bf16.msra.mxu0 0
  %506 = vmatprep.subr.bf16.mxu0 0
  %507 = vmatpush1.bf16.msra.mxu0 0
  %508 = vmatprep.subr.bf16.mxu0 0
  %509 = vmatpush1.bf16.msra.mxu0 0
  %510 = vmatprep.subr.bf16.mxu0 0
  %511 = vmatpush1.bf16.msra.mxu0 0
  %512 = vmatprep.subr.bf16.mxu0 0
  %513 = vmatpush1.bf16.msra.mxu0 0
  %514 = vmatprep.mubr.bf16.mxu0 0
  %515 = vmatmul.mubr.bf16.gmra.mrb[0].mxu0 %v417
  %v516 = vpop.f32.mrb[0].mxu0
  %v517 = vadd.f32 0.0, %v516
  %v518 = vpop.f32.mrb[0].mxu0
  %v519 = vpop.f32.mrb[0].mxu0
  %v520 = vpop.f32.mrb[0].mxu0
  %521 = vdwg.mxu0
  %v522 = vadd.f32 %v416, %v517
  %v523 = vld [vmem:[%s4] sm:$0xff]
  %v524 = vmul.f32 %v415, %v523
  %525 = vadd.xlane.f32.xlu0 %v524
  %v526 = vpop.xlane.xlu0 %525
  %v527 = vld [vmem:[%s5] sm:$0xff]
  %v528 = vadd.f32 %v526, %v527
  %v529 = vmul.f32 %v414, %v522
  %530 = vadd.xlane.f32.xlu0 %v529
  %v531 = vpop.xlane.xlu0 %530
  %v532 = vld [vmem:[%s7] sm:$0xff]
  %v533 = vadd.f32 %v531, %v532
  %v534 = vadd.f32 %v528, %v533
  %v535 = vpack.c.bf16 %v415, %v415
  %v536 = vld [vmem:[%s15] sm:$0xf]
  %v537 = vld [vmem:[%s15 + $0x4] sm:$0xf]
  %v538 = vld [vmem:[%s15 + $0x8] sm:$0xf]
  %v539 = vld [vmem:[%s15 + $0xc] sm:$0xf]
  %v540 = vld [vmem:[%s15 + $0x10] sm:$0xf]
  %v541 = vld [vmem:[%s15 + $0x14] sm:$0xf]
  %v542 = vld [vmem:[%s15 + $0x18] sm:$0xf]
  %v543 = vld [vmem:[%s15 + $0x1c] sm:$0xf]
  %v544 = vld [vmem:[%s15 + $0x20] sm:$0xf]
  %v545 = vld [vmem:[%s15 + $0x24] sm:$0xf]
  %v546 = vld [vmem:[%s15 + $0x28] sm:$0xf]
  %v547 = vld [vmem:[%s15 + $0x2c] sm:$0xf]
  %v548 = vld [vmem:[%s15 + $0x30] sm:$0xf]
  %v549 = vld [vmem:[%s15 + $0x34] sm:$0xf]
  %v550 = vld [vmem:[%s15 + $0x38] sm:$0xf]
  %v551 = vld [vmem:[%s15 + $0x3c] sm:$0xf]
  %v552 = vld [vmem:[%s16] sm:$0x1]
  %v554 = vlaneseq
  %v555 = vshrl.u32 %v554, 7
  %v556 = vsub.s32 0, %v555
  %v557 = vrot.slane %v552, %v556
  %v575 = vunpack.c.l.b16 %v536
  %v576 = vunpack.c.l.b16 %v537
  %v577 = vunpack.c.l.b16 %v538
  %v578 = vunpack.c.l.b16 %v539
  %v579 = vunpack.c.l.b16 %v540
  %v580 = vunpack.c.l.b16 %v541
  %v581 = vunpack.c.l.b16 %v542
  %v582 = vunpack.c.l.b16 %v543
  %v583 = vunpack.c.l.b16 %v544
  %v584 = vunpack.c.l.b16 %v545
  %v585 = vunpack.c.l.b16 %v546
  %v586 = vunpack.c.l.b16 %v547
  %v587 = vunpack.c.l.b16 %v548
  %v588 = vunpack.c.l.b16 %v549
  %v589 = vunpack.c.l.b16 %v550
  %v590 = vunpack.c.l.b16 %v551
  %v591 = vpack.c.b16 %v576, %v575
  %v592 = vpack.c.b16 %v578, %v577
  %v593 = vpack.c.b16 %v580, %v579
  %v594 = vpack.c.b16 %v582, %v581
  %v595 = vpack.c.b16 %v584, %v583
  %v596 = vpack.c.b16 %v586, %v585
  %v597 = vpack.c.b16 %v588, %v587
  %v598 = vpack.c.b16 %v590, %v589
  %607 = vmatprep.subr.bf16.mxu0 0
  %608 = vmatpush1.bf16.xpose.msra.mxu0 %v591
  %609 = vmatprep.subr.bf16.mxu0 0
  %610 = vmatpush1.bf16.xpose.msra.mxu0 %v592
  %611 = vmatprep.subr.bf16.mxu0 0
  %612 = vmatpush1.bf16.xpose.msra.mxu0 %v593
  %613 = vmatprep.subr.bf16.mxu0 0
  %614 = vmatpush1.bf16.xpose.msra.mxu0 %v594
  %615 = vmatprep.subr.bf16.mxu0 0
  %616 = vmatpush1.bf16.xpose.msra.mxu0 %v595
  %617 = vmatprep.subr.bf16.mxu0 0
  %618 = vmatpush1.bf16.xpose.msra.mxu0 %v596
  %619 = vmatprep.subr.bf16.mxu0 0
  %620 = vmatpush1.bf16.xpose.msra.mxu0 %v597
  %621 = vmatprep.subr.bf16.mxu0 0
  %622 = vmatpush1.bf16.xpose.msra.mxu0 %v598
  %623 = vmatprep.subr.bf16.mxu0 0
  %624 = vmatpush1.bf16.xpose.msra.mxu0 0
  %625 = vmatprep.subr.bf16.mxu0 0
  %626 = vmatpush1.bf16.xpose.msra.mxu0 0
  %627 = vmatprep.subr.bf16.mxu0 0
  %628 = vmatpush1.bf16.xpose.msra.mxu0 0
  %629 = vmatprep.subr.bf16.mxu0 0
  %630 = vmatpush1.bf16.xpose.msra.mxu0 0
  %631 = vmatprep.subr.bf16.mxu0 0
  %632 = vmatpush1.bf16.xpose.msra.mxu0 0
  %633 = vmatprep.subr.bf16.mxu0 0
  %634 = vmatpush1.bf16.xpose.msra.mxu0 0
  %635 = vmatprep.subr.bf16.mxu0 0
  %636 = vmatpush1.bf16.xpose.msra.mxu0 0
  %637 = vmatprep.subr.bf16.mxu0 0
  %638 = vmatpush1.bf16.xpose.msra.mxu0 0
  %639 = vmatprep.mubr.bf16.mxu0 0
  %640 = vmatmul.mubr.bf16.gmra.mrb[0].mxu0 %v535
  %v641 = vpop.f32.mrb[0].mxu0
  %v642 = vadd.f32 %v557, %v641
  %v643 = vpop.f32.mrb[0].mxu0
  %v644 = vpop.f32.mrb[0].mxu0
  %v645 = vpop.f32.mrb[0].mxu0
  %646 = vdwg.mxu0
  %v647 = vpack.c.bf16 %v414, %v414
  %v648 = vld [vmem:[%s17] sm:$0xf]
  %v649 = vld [vmem:[%s17 + $0x4] sm:$0xf]
  %v650 = vld [vmem:[%s17 + $0x8] sm:$0xf]
  %v651 = vld [vmem:[%s17 + $0xc] sm:$0xf]
  %v652 = vld [vmem:[%s17 + $0x10] sm:$0xf]
  %v653 = vld [vmem:[%s17 + $0x14] sm:$0xf]
  %v654 = vld [vmem:[%s17 + $0x18] sm:$0xf]
  %v655 = vld [vmem:[%s17 + $0x1c] sm:$0xf]
  %v656 = vld [vmem:[%s17 + $0x20] sm:$0xf]
  %v657 = vld [vmem:[%s17 + $0x24] sm:$0xf]
  %v658 = vld [vmem:[%s17 + $0x28] sm:$0xf]
  %v659 = vld [vmem:[%s17 + $0x2c] sm:$0xf]
  %v660 = vld [vmem:[%s17 + $0x30] sm:$0xf]
  %v661 = vld [vmem:[%s17 + $0x34] sm:$0xf]
  %v662 = vld [vmem:[%s17 + $0x38] sm:$0xf]
  %v663 = vld [vmem:[%s17 + $0x3c] sm:$0xf]
  %v664 = vld [vmem:[%s18] sm:$0x1]
  %v666 = vlaneseq
  %v667 = vshrl.u32 %v666, 7
  %v668 = vsub.s32 0, %v667
  %v669 = vrot.slane %v664, %v668
  %v687 = vunpack.c.l.b16 %v648
  %v688 = vunpack.c.l.b16 %v649
  %v689 = vunpack.c.l.b16 %v650
  %v690 = vunpack.c.l.b16 %v651
  %v691 = vunpack.c.l.b16 %v652
  %v692 = vunpack.c.l.b16 %v653
  %v693 = vunpack.c.l.b16 %v654
  %v694 = vunpack.c.l.b16 %v655
  %v695 = vunpack.c.l.b16 %v656
  %v696 = vunpack.c.l.b16 %v657
  %v697 = vunpack.c.l.b16 %v658
  %v698 = vunpack.c.l.b16 %v659
  %v699 = vunpack.c.l.b16 %v660
  %v700 = vunpack.c.l.b16 %v661
  %v701 = vunpack.c.l.b16 %v662
  %v702 = vunpack.c.l.b16 %v663
  %v703 = vpack.c.b16 %v688, %v687
  %v704 = vpack.c.b16 %v690, %v689
  %v705 = vpack.c.b16 %v692, %v691
  %v706 = vpack.c.b16 %v694, %v693
  %v707 = vpack.c.b16 %v696, %v695
  %v708 = vpack.c.b16 %v698, %v697
  %v709 = vpack.c.b16 %v700, %v699
  %v710 = vpack.c.b16 %v702, %v701
  %719 = vmatprep.subr.bf16.mxu0 0
  %720 = vmatpush1.bf16.xpose.msra.mxu0 %v703
  %721 = vmatprep.subr.bf16.mxu0 0
  %722 = vmatpush1.bf16.xpose.msra.mxu0 %v704
  %723 = vmatprep.subr.bf16.mxu0 0
  %724 = vmatpush1.bf16.xpose.msra.mxu0 %v705
  %725 = vmatprep.subr.bf16.mxu0 0
  %726 = vmatpush1.bf16.xpose.msra.mxu0 %v706
  %727 = vmatprep.subr.bf16.mxu0 0
  %728 = vmatpush1.bf16.xpose.msra.mxu0 %v707
  %729 = vmatprep.subr.bf16.mxu0 0
  %730 = vmatpush1.bf16.xpose.msra.mxu0 %v708
  %731 = vmatprep.subr.bf16.mxu0 0
  %732 = vmatpush1.bf16.xpose.msra.mxu0 %v709
  %733 = vmatprep.subr.bf16.mxu0 0
  %734 = vmatpush1.bf16.xpose.msra.mxu0 %v710
  %735 = vmatprep.subr.bf16.mxu0 0
  %736 = vmatpush1.bf16.xpose.msra.mxu0 0
  %737 = vmatprep.subr.bf16.mxu0 0
  %738 = vmatpush1.bf16.xpose.msra.mxu0 0
  %739 = vmatprep.subr.bf16.mxu0 0
  %740 = vmatpush1.bf16.xpose.msra.mxu0 0
  %741 = vmatprep.subr.bf16.mxu0 0
  %742 = vmatpush1.bf16.xpose.msra.mxu0 0
  %743 = vmatprep.subr.bf16.mxu0 0
  %744 = vmatpush1.bf16.xpose.msra.mxu0 0
  %745 = vmatprep.subr.bf16.mxu0 0
  %746 = vmatpush1.bf16.xpose.msra.mxu0 0
  %747 = vmatprep.subr.bf16.mxu0 0
  %748 = vmatpush1.bf16.xpose.msra.mxu0 0
  %749 = vmatprep.subr.bf16.mxu0 0
  %750 = vmatpush1.bf16.xpose.msra.mxu0 0
  %751 = vmatprep.mubr.bf16.mxu0 0
  %752 = vmatmul.mubr.bf16.gmra.mrb[0].mxu0 %v647
  %v753 = vpop.f32.mrb[0].mxu0
  %v754 = vadd.f32 %v669, %v753
  %v755 = vpop.f32.mrb[0].mxu0
  %v756 = vpop.f32.mrb[0].mxu0
  %v757 = vpop.f32.mrb[0].mxu0
  %758 = vdwg.mxu0
  %v759 = vadd.f32 %v642, %v754
  %v760 = vld [vmem:[%s8] sm:$0xff]
  %v761 = vld [vmem:[%s19] sm:$0x1]
  %v762 = vmin.f32 %v534, 0.0
  %v763 = vand.u32 2147483647, %v534
  %v764 = vsub.f32 0.0, %v763
  %v765 = vmul.f32 %v764, 1.442695
  %v766 = vpow.pop %v765
  %v767 = vadd.f32 %v766, 1.0
  %v768 = vlog2.pop %v767
  %v769 = vmul.f32 %v768, 0.6931472
  %v770 = vmul.f32 -0.5, %v766
  %v771 = vadd.f32 %v770, 1.0
  %v772 = vmul.f32 %v771, %v766
  %v773 = vand.u32 2147483647, %v766
  %vm774 = vcmp.lt.f32.partialorder %v773, 0.0004427343
  %v775 = vsel %vm774, %v772, %v769
  %v776 = vsub.f32 %v762, %v775
  %v777 = vmul.f32 %v776, %v760
  %vm778 = vcmask 7168
  %v779 = vsel %vm778, %v777, 0.0
  %780 = vadd.xlane.f32.xlu0 %v779
  %v781 = vpop.xlane.xlu0 %780
  %v782 = vrot.slane %v781, 4
  %v783 = vadd.f32 %v781, %v782
  %v784 = vrot.slane %v783, 2
  %v785 = vadd.f32 %v783, %v784
  %v786 = vrot.slane %v785, 1
  %v787 = vadd.f32 %v785, %v786
  %s788 = vtos %v787
  %v789 = vsub.f32 0.0, %v759
  %v790 = vmin.f32 %v789, 0.0
  %v791 = vand.u32 2147483647, %v789
  %v792 = vsub.f32 0.0, %v791
  %v793 = vmul.f32 %v792, 1.442695
  %v794 = vpow.pop %v793
  %v795 = vadd.f32 %v794, 1.0
  %v796 = vlog2.pop %v795
  %v797 = vmul.f32 %v796, 0.6931472
  %v798 = vmul.f32 -0.5, %v794
  %v799 = vadd.f32 %v798, 1.0
  %v800 = vmul.f32 %v799, %v794
  %v801 = vand.u32 2147483647, %v794
  %vm802 = vcmp.lt.f32.partialorder %v801, 0.0004427343
  %v803 = vsel %vm802, %v800, %v797
  %v804 = vsub.f32 %v790, %v803
  %806 = vset.pattern.permute.xlu0 0
  %807 = vperm.xlu0 %806, %v760
  %v808 = vpop.permute.xlu0 %807
  %v811 = vlaneseq
  %v812 = vshrl.u32 %v811, 7
  %v813 = vsub.s32 0, %v812
  %v814 = vrot.slane %v761, %v813
  %v816 = vmul.f32 %v808, %v814
  %v817 = vmul.f32 %v804, %v816
  %818 = vadd.xlane.f32.xlu0 %v817
  %v819 = vpop.xlane.xlu0 %818
  %v820 = vrot.slane %v819, 4
  %v821 = vadd.f32 %v819, %v820
  %v822 = vrot.slane %v821, 2
  %v823 = vadd.f32 %v821, %v822
  %v824 = vrot.slane %v823, 1
  %v825 = vadd.f32 %v823, %v824
  %s826 = vtos %v825
  %v827 = vstv %s788
  %828 = vst [vmem:[%s20] sm:$0x1] %v827
  %v829 = vstv %s826
  %830 = vst [vmem:[%s21] sm:$0x1] %v829
  // Predicated region
  $region82: #{ige_forward.1} parent=0 // pred_check
    _
  $region83: #{ige_forward.1} parent=0 // pred_check_branch
    %832 = sbr.rel (0) target = $region85
  $region84: #{ige_forward.1} parent=0 // pred_region
    _
  $region85: #{ige_forward.1} parent=0 // pred_fallthru
    _
  // Predicated region
  $region86: #{ige_forward.1} parent=0 // pred_check
    _
  $region87: #{ige_forward.1} parent=0 // pred_check_branch
    %834 = sbr.rel (0) target = $region89
  $region88: #{ige_forward.1} parent=0 // pred_region
    _
  $region89: #{ige_forward.1} parent=0 // pred_fallthru
    _
  // Predicated region
  $region90: #{ige_forward.1} parent=0 // pred_check
    _
  $region91: #{ige_forward.1} parent=0 // pred_check_branch
    %836 = sbr.rel (0) target = $region93
  $region92: #{ige_forward.1} parent=0 // pred_region
    _
  $region93: #{ige_forward.1} parent=0 // pred_fallthru
    _
  // Predicated region
  $region94: #{ige_forward.1} parent=0 // pred_check
    _
  $region95: #{ige_forward.1} parent=0 // pred_check_branch
    %838 = sbr.rel (0) target = $region97
  $region96: #{ige_forward.1} parent=0 // pred_region
    _
  $region97: #{ige_forward.1} parent=0 // pred_fallthru
    _

</llo_original>
